<compile_context>
chip_gen: v7x
topology: tpu7x:2x2x1
jax: 0.10.0
libtpu: 0.0.40
codegen_flags: <defaults>
</compile_context>

<pallas_src>
import functools

import jax
import jax.numpy as jnp
from jax import lax
from jax.experimental import pallas as pl
from jax.experimental.pallas import tpu as pltpu


# --------------------------------------------------------------------------- #
# Kernel bodies
# --------------------------------------------------------------------------- #
def _sdpa_core(q_ref, k_ref, v_ref, mask_ref, out_ref, attn_ref, inv_temperature):
    # q_ref: (TQ, D), k_ref: (Lk, D), v_ref: (Lk, Dv), mask_ref: (TQ, Lk) int8 or None.
    q = q_ref[...]
    k = k_ref[...]
    v = v_ref[...]

    # Fold 1/temperature into q: TQ*D multiplies instead of TQ*Lk, no divide.
    q_scaled = q * jnp.asarray(inv_temperature, dtype=q.dtype)

    # scores = q @ k^T on the MXU, contracting the last dims directly so no
    # transpose of k is materialized.
    scores = lax.dot_general(
        q_scaled, k,
        dimension_numbers=(((1,), (1,)), ((), ())),
        preferred_element_type=jnp.float32,
    )

    if mask_ref is not None:
        # masked_fill(mask, -inf) via a single VPU select on the int8 mask tile.
        scores = jnp.where(mask_ref[...] != 0, -jnp.inf, scores)

    # Numerically stable row-wise softmax (dim=2 of the batched tensor).
    m = jnp.max(scores, axis=-1, keepdims=True)
    e = jnp.exp(scores - m)
    s = jnp.sum(e, axis=-1, keepdims=True)
    # EUP approximate reciprocal: free slot, (TQ, 1) operand.
    recip = pl.reciprocal(s, approx=True)

    # Dropout: identity in eval mode.

    # output = (e @ v) * recip -- normalize the (TQ, Dv) result instead of the
    # (TQ, Lk) probabilities, so only one f32 (TQ, Lk) temporary feeds the MXU.
    out = lax.dot_general(
        e.astype(v.dtype), v,
        dimension_numbers=(((1,), (0,)), ((), ())),
        preferred_element_type=jnp.float32,
    )
    out = out * recip

    attn_ref[...] = (e * recip).astype(attn_ref.dtype)
    out_ref[...] = out.astype(out_ref.dtype)


def _sdpa_kernel_masked(q_ref, k_ref, v_ref, mask_ref, out_ref, attn_ref, *,
                        inv_temperature):
    _sdpa_core(q_ref, k_ref, v_ref, mask_ref, out_ref, attn_ref, inv_temperature)


def _sdpa_kernel_nomask(q_ref, k_ref, v_ref, out_ref, attn_ref, *,
                        inv_temperature):
    _sdpa_core(q_ref, k_ref, v_ref, None, out_ref, attn_ref, inv_temperature)


# --------------------------------------------------------------------------- #
# VMEM budget & tile selection
# --------------------------------------------------------------------------- #
def _derive_vmem_limit_bytes():
    """3/4 of physical VMEM (capped), falling back to a v7x-safe default."""
    cap = 0
    try:
        info = pltpu.get_tpu_info()
        cap = int(getattr(info, "vmem_capacity_bytes", 0) or 0)
    except Exception:
        cap = 0
    if cap <= 0:
        cap = 64 * 1024 * 1024  # conservative (v7x per-TC physical VMEM)
    return min((cap * 3) // 4, 100 * 1024 * 1024)


def _estimate_step_vmem(tq, lk, d, dv, itemsize, has_mask):
    """Rough per-step VMEM footprint: double-buffered tiles + f32 temporaries."""
    q_t = tq * d * itemsize
    o_t = tq * dv * itemsize
    a_t = tq * lk * itemsize          # attn output tile
    m_t = tq * lk if has_mask else 0  # int8 mask tile
    k_t = lk * d * itemsize
    v_t = lk * dv * itemsize
    pipelined = 2 * (q_t + o_t + a_t + m_t + k_t + v_t)  # double-buffering
    temps = 3 * tq * lk * 4           # scores / e / attn f32 temporaries
    return pipelined + temps


def _pick_q_tile(lq, lk, d, dv, itemsize, has_mask, vmem_budget):
    # Prefer large, 256-multiple tiles (v6e/v7x MXU is 2x256x256; v5e 4x128x128),
    # but only those whose estimated footprint fits the derived VMEM budget --
    # this is what keeps v7x (64 MiB) from over-committing at large Lk.
    cands = [c for c in (512, 256, 128, 64, 32, 16, 8) if c <= lq and lq % c == 0]
    if not cands:
        cands = [lq]  # tiny / irregular Lq: single full tile (sublane-padded)
    for tq in cands:
        if _estimate_step_vmem(tq, lk, d, dv, itemsize, has_mask) <= vmem_budget:
            return tq
    return cands[-1]


# --------------------------------------------------------------------------- #
# Wrapper
# --------------------------------------------------------------------------- #
def scaled_dot_product_attention(q, k, v, temperature, mask=None):
    """q: [B, Lq, D], k: [B, Lk, D], v: [B, Lk, Dv], mask: [Lq, Lk] bool or None."""
    B, Lq, D = q.shape
    Bk, Lk, Dk = k.shape
    Bv, Lkv, Dv = v.shape
    assert B == Bk == Bv and D == Dk and Lk == Lkv
    if mask is not None:
        assert mask.shape == (Lq, Lk)

    vmem_limit = _derive_vmem_limit_bytes()
    itemsize = jnp.dtype(q.dtype).itemsize
    tq = _pick_q_tile(Lq, Lk, D, Dv, itemsize, mask is not None, vmem_limit)
    n_q_tiles = Lq // tq
    inv_temperature = 1.0 / float(temperature)

    out_shapes = (
        jax.ShapeDtypeStruct((B, Lq, Dv), q.dtype),   # output
        jax.ShapeDtypeStruct((B, Lq, Lk), q.dtype),   # attn (module returns it)
    )

    # qi is the inner grid axis: k/v block indices only depend on b, so they are
    # NOT re-fetched while iterating over query tiles of the same batch element.
    q_spec = pl.BlockSpec((pl.Squeezed(), tq, D), lambda b, qi: (b, qi, 0))
    k_spec = pl.BlockSpec((pl.Squeezed(), Lk, D), lambda b, qi: (b, 0, 0))
    v_spec = pl.BlockSpec((pl.Squeezed(), Lk, Dv), lambda b, qi: (b, 0, 0))
    out_spec = pl.BlockSpec((pl.Squeezed(), tq, Dv), lambda b, qi: (b, qi, 0))
    attn_spec = pl.BlockSpec((pl.Squeezed(), tq, Lk), lambda b, qi: (b, qi, 0))

    if mask is None:
        kernel = functools.partial(_sdpa_kernel_nomask,
                                   inv_temperature=inv_temperature)
        in_specs = [q_spec, k_spec, v_spec]
        args = (q, k, v)
    else:
        # int8 mask stream (1 byte/elem) applied in-kernel; no f32 bias array.
        mask_i8 = mask.astype(jnp.int8)
        mask_spec = pl.BlockSpec((tq, Lk), lambda b, qi: (qi, 0))
        kernel = functools.partial(_sdpa_kernel_masked,
                                   inv_temperature=inv_temperature)
        in_specs = [q_spec, k_spec, v_spec, mask_spec]
        args = (q, k, v, mask_i8)

    grid_spec = pltpu.PrefetchScalarGridSpec(
        num_scalar_prefetch=0,
        grid=(B, n_q_tiles),
        in_specs=in_specs,
        out_specs=[out_spec, attn_spec],
    )

    return pl.pallas_call(
        kernel,
        out_shape=out_shapes,
        grid_spec=grid_spec,
        compiler_params=pltpu.CompilerParams(
            # Both axes parallel: megacore / v7x dual-TC can shard either axis,
            # so work is available even when B == 1 (as long as n_q_tiles > 1).
            dimension_semantics=("parallel", "parallel"),
            vmem_limit_bytes=int(vmem_limit),
        ),
    )(*args)


# --------------------------------------------------------------------------- #
# Reference & self-test
# --------------------------------------------------------------------------- #
def _reference(q, k, v, temperature, mask=None):
    attn = jnp.einsum("bqd,bkd->bqk", q, k) / temperature
    if mask is not None:
        attn = jnp.where(mask[None, :, :], -jnp.inf, attn)
    attn = jax.nn.softmax(attn, axis=2)
    out = jnp.einsum("bqk,bkd->bqd", attn, v)
    return out, attn


if __name__ == "__main__":
    key = jax.random.PRNGKey(0)
    kq, kk, kv, km = jax.random.split(key, 4)

    B, Lq, Lk, D, Dv = 2, 8, 8, 32, 32
    temperature = float(D) ** 0.5

    q = jax.random.normal(kq, (B, Lq, D), dtype=jnp.float32)
    k = jax.random.normal(kk, (B, Lk, D), dtype=jnp.float32)
    v = jax.random.normal(kv, (B, Lk, Dv), dtype=jnp.float32)
    # Deterministic mask: mask out strict upper-triangular entries (causal),
    # so every row keeps at least one unmasked entry (no NaN rows).
    mask = jnp.triu(jnp.ones((Lq, Lk), dtype=bool), k=1)

    out, attn = scaled_dot_product_attention(q, k, v, temperature, mask=mask)
    out = jax.block_until_ready(out)
    attn = jax.block_until_ready(attn)

    ref_out, ref_attn = _reference(q, k, v, temperature, mask=mask)

    # Tolerance accounts for the EUP approximate reciprocal (~1e-3-level rel err).
    TOL = 5e-3
    assert out.shape == (B, Lq, Dv) and attn.shape == (B, Lq, Lk)
    assert jnp.allclose(out, ref_out, atol=TOL, rtol=TOL)
    assert jnp.allclose(attn, ref_attn, atol=TOL, rtol=TOL)

    # Also check the no-mask path (mask input / DMA skipped entirely).
    out2, attn2 = scaled_dot_product_attention(q, k, v, temperature, mask=None)
    out2 = jax.block_until_ready(out2)
    ref_out2, ref_attn2 = _reference(q, k, v, temperature, mask=None)
    assert jnp.allclose(out2, ref_out2, atol=TOL, rtol=TOL)
    assert jnp.allclose(attn2, ref_attn2, atol=TOL, rtol=TOL)

    print("KERNEL_OK")
</pallas_src>

<mosaic_0001>
module attributes {stable_mosaic.version = 11 : i64} {
  func.func @_sdpa_kernel_masked(%arg0: i32, %arg1: i32, %arg2: memref<1x8x32xf32, #tpu.memory_space<vmem>>, %arg3: memref<1x8x32xf32, #tpu.memory_space<vmem>>, %arg4: memref<1x8x32xf32, #tpu.memory_space<vmem>>, %arg5: memref<8x8xi8, #tpu.memory_space<vmem>>, %arg6: memref<1x8x32xf32, #tpu.memory_space<vmem>>, %arg7: memref<1x8x8xf32, #tpu.memory_space<vmem>>) attributes {dimension_semantics = [#tpu.dimension_semantics<parallel>, #tpu.dimension_semantics<parallel>], iteration_bounds = array<i64: 2, 1>, scalar_prefetch = 0 : i64, scratch_operands = 0 : i64, tpu.core_type = #tpu.core_type<tc>, window_params = [{transform_indices = @transform_0, window_bounds = array<i64: 1, 8, 32>}, {transform_indices = @transform_1, window_bounds = array<i64: 1, 8, 32>}, {transform_indices = @transform_2, window_bounds = array<i64: 1, 8, 32>}, {transform_indices = @transform_3, window_bounds = array<i64: 8, 8>}, {transform_indices = @transform_4, window_bounds = array<i64: 1, 8, 32>}, {transform_indices = @transform_5, window_bounds = array<i64: 1, 8, 8>}]} {
    %c0 = arith.constant 0 : index
    %c0_0 = arith.constant 0 : index
    %c0_1 = arith.constant 0 : index
    %0 = vector.load %arg2[%c0, %c0_0, %c0_1] : memref<1x8x32xf32, #tpu.memory_space<vmem>>, vector<1x8x32xf32>
    %1 = vector.shape_cast %0 : vector<1x8x32xf32> to vector<8x32xf32>
    %c0_2 = arith.constant 0 : index
    %c0_3 = arith.constant 0 : index
    %c0_4 = arith.constant 0 : index
    %2 = vector.load %arg3[%c0_2, %c0_3, %c0_4] : memref<1x8x32xf32, #tpu.memory_space<vmem>>, vector<1x8x32xf32>
    %3 = vector.shape_cast %2 : vector<1x8x32xf32> to vector<8x32xf32>
    %c0_5 = arith.constant 0 : index
    %c0_6 = arith.constant 0 : index
    %c0_7 = arith.constant 0 : index
    %4 = vector.load %arg4[%c0_5, %c0_6, %c0_7] : memref<1x8x32xf32, #tpu.memory_space<vmem>>, vector<1x8x32xf32>
    %5 = vector.shape_cast %4 : vector<1x8x32xf32> to vector<8x32xf32>
    %cst = arith.constant 0.176776692 : f32
    %6 = vector.broadcast %cst : f32 to vector<8x32xf32>
    %7 = arith.mulf %1, %6 : vector<8x32xf32>
    %cst_8 = arith.constant dense<0.000000e+00> : vector<8x8xf32>
    %8 = tpu.matmul %7, %3, %cst_8 {dimension_numbers = #tpu.dot_dimension_numbers<[1], [1], [0], [0], [0, 0, 1, 0], [], []>} : vector<8x32xf32>, vector<8x32xf32>, vector<8x8xf32> -> vector<8x8xf32>
    %c0_9 = arith.constant 0 : index
    %c0_10 = arith.constant 0 : index
    %9 = vector.load %arg5[%c0_9, %c0_10] : memref<8x8xi8, #tpu.memory_space<vmem>>, vector<8x8xi8>
    %c0_i8 = arith.constant 0 : i8
    %10 = vector.broadcast %c0_i8 : i8 to vector<8x8xi8>
    %11 = arith.cmpi ne, %9, %10 : vector<8x8xi8>
    %cst_11 = arith.constant 0xFF800000 : f32
    %12 = vector.broadcast %cst_11 : f32 to vector<8x8xf32>
    %13 = arith.select %11, %12, %8 : vector<8x8xi1>, vector<8x8xf32>
    %cst_12 = arith.constant dense<0xFF800000> : vector<8xf32>
    %14 = vector.multi_reduction <maximumf>, %13, %cst_12 [1] : vector<8x8xf32> to vector<8xf32>
    %15 = vector.shape_cast %14 : vector<8xf32> to vector<8x1xf32>
    %16 = vector.broadcast %15 : vector<8x1xf32> to vector<8x8xf32>
    %17 = arith.subf %13, %16 : vector<8x8xf32>
    %18 = math.exp %17 : vector<8x8xf32>
    %cst_13 = arith.constant dense<0.000000e+00> : vector<8xf32>
    %19 = vector.multi_reduction <add>, %18, %cst_13 [1] : vector<8x8xf32> to vector<8xf32>
    %20 = vector.shape_cast %19 : vector<8xf32> to vector<8x1xf32>
    %21 = tpu.reciprocal %20 {approx = true} : vector<8x1xf32> -> vector<8x1xf32>
    %cst_14 = arith.constant dense<0.000000e+00> : vector<8x32xf32>
    %22 = tpu.matmul %18, %5, %cst_14 {dimension_numbers = #tpu.dot_dimension_numbers<[1], [0], [0], [1], [0, 0, 1, 1], [], []>} : vector<8x8xf32>, vector<8x32xf32>, vector<8x32xf32> -> vector<8x32xf32>
    %23 = vector.broadcast %21 : vector<8x1xf32> to vector<8x32xf32>
    %24 = arith.mulf %22, %23 : vector<8x32xf32>
    %25 = vector.broadcast %21 : vector<8x1xf32> to vector<8x8xf32>
    %26 = arith.mulf %18, %25 : vector<8x8xf32>
    %c0_15 = arith.constant 0 : index
    %c0_16 = arith.constant 0 : index
    %c0_17 = arith.constant 0 : index
    %27 = vector.load %arg7[%c0_15, %c0_16, %c0_17] : memref<1x8x8xf32, #tpu.memory_space<vmem>>, vector<1x8x8xf32>
    %28 = vector.shape_cast %27 : vector<1x8x8xf32> to vector<8x8xf32>
    %29 = vector.shape_cast %26 : vector<8x8xf32> to vector<1x8x8xf32>
    tpu.vector_store %arg7[%c0_15, %c0_16, %c0_17], %29 {strides = array<i32>} : memref<1x8x8xf32, #tpu.memory_space<vmem>>, vector<1x8x8xf32>,
    %c0_18 = arith.constant 0 : index
    %c0_19 = arith.constant 0 : index
    %c0_20 = arith.constant 0 : index
    %30 = vector.load %arg6[%c0_18, %c0_19, %c0_20] : memref<1x8x32xf32, #tpu.memory_space<vmem>>, vector<1x8x32xf32>
    %31 = vector.shape_cast %30 : vector<1x8x32xf32> to vector<8x32xf32>
    %32 = vector.shape_cast %24 : vector<8x32xf32> to vector<1x8x32xf32>
    tpu.vector_store %arg6[%c0_18, %c0_19, %c0_20], %32 {strides = array<i32>} : memref<1x8x32xf32, #tpu.memory_space<vmem>>, vector<1x8x32xf32>,
    return
  }
  func.func @transform_0(%arg0: i32, %arg1: i32) -> (i32, i32, i32) {
    %c0_i32 = arith.constant 0 : i32
    %c0_i32_0 = arith.constant 0 : i32
    return %arg0, %arg1, %c0_i32 : i32, i32, i32
  }
  func.func @transform_1(%arg0: i32, %arg1: i32) -> (i32, i32, i32) {
    %c0_i32 = arith.constant 0 : i32
    %c0_i32_0 = arith.constant 0 : i32
    %c0_i32_1 = arith.constant 0 : i32
    return %arg0, %c0_i32, %c0_i32_0 : i32, i32, i32
  }
  func.func @transform_2(%arg0: i32, %arg1: i32) -> (i32, i32, i32) {
    %c0_i32 = arith.constant 0 : i32
    %c0_i32_0 = arith.constant 0 : i32
    %c0_i32_1 = arith.constant 0 : i32
    return %arg0, %c0_i32, %c0_i32_0 : i32, i32, i32
  }
  func.func @transform_3(%arg0: i32, %arg1: i32) -> (i32, i32) {
    %c0_i32 = arith.constant 0 : i32
    %c0_i32_0 = arith.constant 0 : i32
    return %arg1, %c0_i32 : i32, i32
  }
  func.func @transform_4(%arg0: i32, %arg1: i32) -> (i32, i32, i32) {
    %c0_i32 = arith.constant 0 : i32
    %c0_i32_0 = arith.constant 0 : i32
    return %arg0, %arg1, %c0_i32 : i32, i32, i32
  }
  func.func @transform_5(%arg0: i32, %arg1: i32) -> (i32, i32, i32) {
    %c0_i32 = arith.constant 0 : i32
    %c0_i32_0 = arith.constant 0 : i32
    return %arg0, %arg1, %c0_i32 : i32, i32, i32
  }
}

</mosaic_0001>

<llo_original>
// kernel: tpu_custom_call.1
$region0: #{tpu_custom_call.1}
  #allocation0 [shape = 'u32[]', space=smem, size = 0x4, offset = 0x4, fixed_abs, tag = 'smem constant byte address 0x4 - core index']
  #allocation1 [shape = 'u32[144,128]{1,0:T(1,128)}', space=vmem, size = 0x12000, scoped, tag = 'internal scratch']
  %s0 = inlined_call_operand.hbm [shape: f32[2,8,32], index: 0, kind: input, shape index: {}]
  %s1 = inlined_call_operand.hbm [shape: f32[2,8,32], index: 1, kind: input, shape index: {}]
  %s2 = inlined_call_operand.hbm [shape: f32[2,8,32], index: 2, kind: input, shape index: {}]
  %s3 = inlined_call_operand.vmem [shape: s8[8,8], index: 3, kind: input, shape index: {}]
  %s4 = inlined_call_operand.hbm [shape: f32[2,8,32], index: 4, kind: output, shape index: {0}]
  %s5 = inlined_call_operand.hbm [shape: f32[2,8,8], index: 5, kind: output, shape index: {1}]
  %6 = xla_tuple %s4, %s5
  %s7 = sld [smem:[#allocation0]]
  $region69: #{tpu_custom_call.1} parent=0
    _
  %s9 = ssub.s32 1, %s7
  %s10 = scalar_select 0, %s9, %s7
  $region1: #{tpu_custom_call.1} parent=0
    #allocation2 [shape = 'u8[8192]{0}', space=vmem, size = 0x2000, scoped, tag = 'input window, operand 0']
    #allocation3 [shape = 's32[2]{0}', space=sflag, size = 0x8, scoped, tag = 'scoped memory for tpu_custom_call.1']
    #allocation4 [shape = 's32[2]{0}', space=sflag, size = 0x8, scoped, tag = 'scoped memory for tpu_custom_call.1']
    #allocation5 [shape = 'u8[8192]{0}', space=vmem, size = 0x2000, scoped, tag = 'input window, operand 1']
    #allocation6 [shape = 's32[2]{0}', space=sflag, size = 0x8, scoped, tag = 'scoped memory for tpu_custom_call.1']
    #allocation7 [shape = 'u8[8192]{0}', space=vmem, size = 0x2000, scoped, tag = 'input window, operand 2']
    #allocation8 [shape = 'u8[8192]{0}', space=vmem, size = 0x2000, scoped, tag = 'output window, operand 0']
    #allocation9 [shape = 'u8[8192]{0}', space=vmem, size = 0x2000, scoped, tag = 'output window, operand 1']
    #allocation10 [shape = 's32[2]{0}', space=sflag, size = 0x8, scoped, tag = 'scoped memory for tpu_custom_call.1']
    %11 = vsyncpa [#allocation3], 0
    %s12 = scalar_lea.sflag [#allocation3], 1
    %13 = vsyncpa %s12, 0
    %14 = vsyncpa [#allocation6], 0
    %s15 = scalar_lea.sflag [#allocation6], 1
    %16 = vsyncpa %s15, 0
    %17 = vsyncpa [#allocation4], 0
    %s18 = scalar_lea.sflag [#allocation4], 1
    %19 = vsyncpa %s18, 0
    %20 = vsyncpa [#allocation10], 0
    %s21 = scalar_lea.sflag [#allocation10], 1
    %22 = vsyncpa %s21, 0
    loop: start=0, step=1, limit=4
    $region2: #{tpu_custom_call.1} parent=1 // loop_pre_header
      _
    $region3: #{tpu_custom_call.1} parent=1 // loop_header
      %s24 = sphi 0, %s28
      %p25 = scmp.ge.s32.totalorder %s24, 4
      %s31 = sphi 0, %s43
      %s32 = sphi 0, %s39
      %s33 = sphi 0, %s31
      %s34 = sphi 0, %s32
      %s35 = sphi 0, %s33
      %s36 = sphi 0, %s34
      %s48 = sphi 0, %s50
      %s51 = sphi 0, %s48
      %s52 = sphi 0, %s51
      %s68 = sphi 0, %s52
      %s74 = sphi 0, %s76
      %s77 = sphi 0, %s74
      %s78 = sphi 0, %s77
      %s94 = sphi 0, %s78
      %s100 = sphi 0, %s102
      %s103 = sphi 0, %s100
      %s104 = sphi 0, %s103
      %s120 = sphi 0, %s104
      %s126 = sphi 0, %s128
      %s129 = sphi 0, %s126
      %s130 = sphi 0, %s129
      %s146 = sphi 0, %s130
      %s154 = sphi 0, %s156
      %s157 = sphi 0, %s154
      %s158 = sphi 0, %s157
      %s174 = sphi 0, %s158
      %s182 = sphi 0, %s184
      %s185 = sphi 0, %s182
      %s186 = sphi 0, %s185
      %s202 = sphi 0, %s186
    $region4: #{tpu_custom_call.1} parent=1 // loop_header_branch
      %27 = sbr.rel (%p25) target = $region8
    $region5: #{tpu_custom_call.1} parent=1 // loop_body
      %s29 = ssub.s32 %s24, 1
      %s30 = ssub.s32 %s24, 2
      %s37 = sadd.s32 1, %s32
      %p38 = scmp.ge.s32.totalorder %s37, 1
      %s39 = scalar_select %p38, 0, %s37
      %s40 = sadd.s32 1, %s31
      %s41 = scalar_select %p38, %s40, %s31
      %p42 = scmp.ge.s32.totalorder %s41, 2
      %s43 = scalar_select %p42, 0, %s41
      %s44 = ssub.s32 %s31, %s43
      %s45 = ssub.s32 %s32, %s39
      %s46 = sor.u32 %s44, %s45
      %p47 = scmp.eq.s32.totalorder %s46, 0
      %s49 = sadd.s32 %s48, 1
      %s50 = scalar_select %p47, %s48, %s49
      %p53 = pneg %p47
      %p54 = scmp.eq.s32.totalorder %s24, 1
      %p55 = por %p53, %p54
      %p56 = scmp.ne.s32.totalorder %s48, %s51
      %p57 = scmp.eq.s32.totalorder %s24, 0
      %p58 = por %p56, %p57
      %p59 = scmp.ne.s32.totalorder %s48, %s51
      %p60 = scmp.eq.s32.totalorder %s29, 1
      %p61 = por %p59, %p60
      %p62 = scmp.ne.s32.totalorder %s51, %s52
      %p63 = scmp.eq.s32.totalorder %s29, 0
      %p64 = por %p62, %p63
      %p65 = scmp.ne.s32.totalorder %s51, %s52
      %p66 = scmp.eq.s32.totalorder %s30, 1
      %p67 = por %p65, %p66
      %p69 = scmp.ne.s32.totalorder %s52, %s68
      %p70 = scmp.eq.s32.totalorder %s30, 0
      %p71 = por %p69, %p70
      %s72 = ssub.s32 %s31, %s43
      %p73 = scmp.eq.s32.totalorder %s72, 0
      %s75 = sadd.s32 %s74, 1
      %s76 = scalar_select %p73, %s74, %s75
      %p79 = pneg %p73
      %p80 = scmp.eq.s32.totalorder %s24, 1
      %p81 = por %p79, %p80
      %p82 = scmp.ne.s32.totalorder %s74, %s77
      %p83 = scmp.eq.s32.totalorder %s24, 0
      %p84 = por %p82, %p83
      %p85 = scmp.ne.s32.totalorder %s74, %s77
      %p86 = scmp.eq.s32.totalorder %s29, 1
      %p87 = por %p85, %p86
      %p88 = scmp.ne.s32.totalorder %s77, %s78
      %p89 = scmp.eq.s32.totalorder %s29, 0
      %p90 = por %p88, %p89
      %p91 = scmp.ne.s32.totalorder %s77, %s78
      %p92 = scmp.eq.s32.totalorder %s30, 1
      %p93 = por %p91, %p92
      %p95 = scmp.ne.s32.totalorder %s78, %s94
      %p96 = scmp.eq.s32.totalorder %s30, 0
      %p97 = por %p95, %p96
      %s98 = ssub.s32 %s31, %s43
      %p99 = scmp.eq.s32.totalorder %s98, 0
      %s101 = sadd.s32 %s100, 1
      %s102 = scalar_select %p99, %s100, %s101
      %p105 = pneg %p99
      %p106 = scmp.eq.s32.totalorder %s24, 1
      %p107 = por %p105, %p106
      %p108 = scmp.ne.s32.totalorder %s100, %s103
      %p109 = scmp.eq.s32.totalorder %s24, 0
      %p110 = por %p108, %p109
      %p111 = scmp.ne.s32.totalorder %s100, %s103
      %p112 = scmp.eq.s32.totalorder %s29, 1
      %p113 = por %p111, %p112
      %p114 = scmp.ne.s32.totalorder %s103, %s104
      %p115 = scmp.eq.s32.totalorder %s29, 0
      %p116 = por %p114, %p115
      %p117 = scmp.ne.s32.totalorder %s103, %s104
      %p118 = scmp.eq.s32.totalorder %s30, 1
      %p119 = por %p117, %p118
      %p121 = scmp.ne.s32.totalorder %s104, %s120
      %p122 = scmp.eq.s32.totalorder %s30, 0
      %p123 = por %p121, %p122
      %s124 = ssub.s32 %s32, %s39
      %p125 = scmp.eq.s32.totalorder %s124, 0
      %s127 = sadd.s32 %s126, 1
      %s128 = scalar_select %p125, %s126, %s127
      %p131 = pneg %p125
      %p132 = scmp.eq.s32.totalorder %s24, 1
      %p133 = por %p131, %p132
      %p134 = scmp.ne.s32.totalorder %s126, %s129
      %p135 = scmp.eq.s32.totalorder %s24, 0
      %p136 = por %p134, %p135
      %p137 = scmp.ne.s32.totalorder %s126, %s129
      %p138 = scmp.eq.s32.totalorder %s29, 1
      %p139 = por %p137, %p138
      %p140 = scmp.ne.s32.totalorder %s129, %s130
      %p141 = scmp.eq.s32.totalorder %s29, 0
      %p142 = por %p140, %p141
      %p143 = scmp.ne.s32.totalorder %s129, %s130
      %p144 = scmp.eq.s32.totalorder %s30, 1
      %p145 = por %p143, %p144
      %p147 = scmp.ne.s32.totalorder %s130, %s146
      %p148 = scmp.eq.s32.totalorder %s30, 0
      %p149 = por %p147, %p148
      %s150 = ssub.s32 %s31, %s43
      %s151 = ssub.s32 %s32, %s39
      %s152 = sor.u32 %s150, %s151
      %p153 = scmp.eq.s32.totalorder %s152, 0
      %s155 = sadd.s32 %s154, 1
      %s156 = scalar_select %p153, %s154, %s155
      %p159 = pneg %p153
      %p160 = scmp.eq.s32.totalorder %s24, 1
      %p161 = por %p159, %p160
      %p162 = scmp.ne.s32.totalorder %s154, %s157
      %p163 = scmp.eq.s32.totalorder %s24, 0
      %p164 = por %p162, %p163
      %p165 = scmp.ne.s32.totalorder %s154, %s157
      %p166 = scmp.eq.s32.totalorder %s29, 1
      %p167 = por %p165, %p166
      %p168 = scmp.ne.s32.totalorder %s157, %s158
      %p169 = scmp.eq.s32.totalorder %s29, 0
      %p170 = por %p168, %p169
      %p171 = scmp.ne.s32.totalorder %s157, %s158
      %p172 = scmp.eq.s32.totalorder %s30, 1
      %p173 = por %p171, %p172
      %p175 = scmp.ne.s32.totalorder %s158, %s174
      %p176 = scmp.eq.s32.totalorder %s30, 0
      %p177 = por %p175, %p176
      %s178 = ssub.s32 %s31, %s43
      %s179 = ssub.s32 %s32, %s39
      %s180 = sor.u32 %s178, %s179
      %p181 = scmp.eq.s32.totalorder %s180, 0
      %s183 = sadd.s32 %s182, 1
      %s184 = scalar_select %p181, %s182, %s183
      %p187 = pneg %p181
      %p188 = scmp.eq.s32.totalorder %s24, 1
      %p189 = por %p187, %p188
      %p190 = scmp.ne.s32.totalorder %s182, %s185
      %p191 = scmp.eq.s32.totalorder %s24, 0
      %p192 = por %p190, %p191
      %p193 = scmp.ne.s32.totalorder %s182, %s185
      %p194 = scmp.eq.s32.totalorder %s29, 1
      %p195 = por %p193, %p194
      %p196 = scmp.ne.s32.totalorder %s185, %s186
      %p197 = scmp.eq.s32.totalorder %s29, 0
      %p198 = por %p196, %p197
      %p199 = scmp.ne.s32.totalorder %s185, %s186
      %p200 = scmp.eq.s32.totalorder %s30, 1
      %p201 = por %p199, %p200
      %p203 = scmp.ne.s32.totalorder %s186, %s202
      %p204 = scmp.eq.s32.totalorder %s30, 0
      %p205 = por %p203, %p204
      %p206 = scmp.le.s32.totalorder 1, %s24
      %p207 = scmp.lt.s32.totalorder %s24, 3
      %p208 = pnand %p206, %p207
      %p209 = pneg %p208
      // Predicated region
      $region9: #{tpu_custom_call.1} parent=5 // pred_check
        _
      $region10: #{tpu_custom_call.1} parent=5 // pred_check_branch
        %211 = sbr.rel (%p208) target = $region12
      $region11: #{tpu_custom_call.1} parent=5 // pred_region
        %s212 = ssub.s32 %s24, 1
        // Predicated region
        $region13: #{tpu_custom_call.1} parent=11 // pred_check
          %p213 = pneg %p142
        $region14: #{tpu_custom_call.1} parent=11 // pred_check_branch
          %215 = sbr.rel (%p213) target = $region16
        $region15: #{tpu_custom_call.1} parent=11 // pred_region
          %p216 = scmp.lt.s32.totalorder %s34, 0
          %s217 = scalar_select %p216, %s34, 0
          %s218 = smul.addr %s217, 2
          %s219 = scalar_lea.vmem %s3, %s218
        $region16: #{tpu_custom_call.1} parent=11 // pred_fallthru
          _
      $region12: #{tpu_custom_call.1} parent=5 // pred_fallthru
        _
      %p220 = scmp.lt.s32.totalorder %s24, 2
      // Predicated region
      $region17: #{tpu_custom_call.1} parent=5 // pred_check
        %p221 = pneg %p220
      $region18: #{tpu_custom_call.1} parent=5 // pred_check_branch
        %223 = sbr.rel (%p221) target = $region20
      $region19: #{tpu_custom_call.1} parent=5 // pred_region
        // Predicated region
        $region21: #{tpu_custom_call.1} parent=19 // pred_check
          %p224 = pneg %p58
        $region22: #{tpu_custom_call.1} parent=19 // pred_check_branch
          %226 = sbr.rel (%p224) target = $region24
        $region23: #{tpu_custom_call.1} parent=19 // pred_region
          %s227 = sand.u32 %s48, 1
          %s228 = scalar_lea.sflag [#allocation3], %s227
          %s229 = sand.u32 %s48, 1
          %s230 = smul.addr %s229, 8
          %s231 = scalar_lea.vmem [#allocation2], %s230
          %s233 = ssub.s32 128, 128
          %234 = vsyncadd %s228, %s233
          %s235 = sadd.s32 %s32, %s31
          %s236 = smul.addr %s235, 128
          %s237 = scalar_lea.hbm %s0, %s236
          %s239 = sshll.u32 %s231, 4
          %s240 = int_to_ptr.vmem [resolvable:$true] %s239
          %242 = dma.hbm_to_vmem [thread:$0]  %s237, 128, %s240, %s228
        $region24: #{tpu_custom_call.1} parent=19 // pred_fallthru
          _
        // Predicated region
        $region25: #{tpu_custom_call.1} parent=19 // pred_check
          %p243 = pneg %p84
        $region26: #{tpu_custom_call.1} parent=19 // pred_check_branch
          %245 = sbr.rel (%p243) target = $region28
        $region27: #{tpu_custom_call.1} parent=19 // pred_region
          %s246 = sand.u32 %s24, 1
          %s247 = scalar_lea.sflag [#allocation6], %s246
          %s248 = sand.u32 %s74, 1
          %s249 = smul.addr %s248, 8
          %s250 = scalar_lea.vmem [#allocation5], %s249
          %s252 = ssub.s32 128, 128
          %253 = vsyncadd %s247, %s252
          %s254 = smul.addr %s31, 128
          %s255 = scalar_lea.hbm %s1, %s254
          %s257 = sshll.u32 %s250, 4
          %s258 = int_to_ptr.vmem [resolvable:$true] %s257
          %260 = dma.hbm_to_vmem [thread:$0]  %s255, 128, %s258, %s247
        $region28: #{tpu_custom_call.1} parent=19 // pred_fallthru
          _
        // Predicated region
        $region29: #{tpu_custom_call.1} parent=19 // pred_check
          %p261 = pneg %p110
        $region30: #{tpu_custom_call.1} parent=19 // pred_check_branch
          %263 = sbr.rel (%p261) target = $region32
        $region31: #{tpu_custom_call.1} parent=19 // pred_region
          %s264 = sand.u32 %s24, 1
          %s265 = scalar_lea.sflag [#allocation6], %s264
          %s266 = sand.u32 %s100, 1
          %s267 = smul.addr %s266, 8
          %s268 = scalar_lea.vmem [#allocation7], %s267
          %s270 = ssub.s32 128, 128
          %271 = vsyncadd %s265, %s270
          %s272 = smul.addr %s31, 128
          %s273 = scalar_lea.hbm %s2, %s272
          %s275 = sshll.u32 %s268, 4
          %s276 = int_to_ptr.vmem [resolvable:$true] %s275
          %278 = dma.hbm_to_vmem [thread:$0]  %s273, 128, %s276, %s265
        $region32: #{tpu_custom_call.1} parent=19 // pred_fallthru
          _
      $region20: #{tpu_custom_call.1} parent=5 // pred_fallthru
        _
      %p279 = scmp.le.s32.totalorder 1, %s24
      %p280 = scmp.lt.s32.totalorder %s24, 3
      %p281 = pnand %p279, %p280
      %p282 = pneg %p281
      // Predicated region
      $region33: #{tpu_custom_call.1} parent=5 // pred_check
        _
      $region34: #{tpu_custom_call.1} parent=5 // pred_check_branch
        %284 = sbr.rel (%p281) target = $region36
      $region35: #{tpu_custom_call.1} parent=5 // pred_region
        %s285 = ssub.s32 %s24, 1
        %s286 = sand.u32 %s51, 1
        %s287 = scalar_lea.sflag [#allocation3], %s286
        %s288 = sand.u32 %s51, 1
        %s289 = smul.addr %s288, 8
        %s290 = scalar_lea.vmem [#allocation2], %s289
        // Predicated region
        $region37: #{tpu_custom_call.1} parent=35 // pred_check
          %p291 = pneg %p64
        $region38: #{tpu_custom_call.1} parent=35 // pred_check_branch
          %293 = sbr.rel (%p291) target = $region40
        $region39: #{tpu_custom_call.1} parent=35 // pred_region
          %294 = dma.done %s287, 128
        $region40: #{tpu_custom_call.1} parent=35 // pred_fallthru
          _
        %s295 = sand.u32 %s29, 1
        %s296 = scalar_lea.sflag [#allocation6], %s295
        %s297 = sand.u32 %s77, 1
        %s298 = smul.addr %s297, 8
        %s299 = scalar_lea.vmem [#allocation5], %s298
        // Predicated region
        $region41: #{tpu_custom_call.1} parent=35 // pred_check
          %p300 = pneg %p90
        $region42: #{tpu_custom_call.1} parent=35 // pred_check_branch
          %302 = sbr.rel (%p300) target = $region44
        $region43: #{tpu_custom_call.1} parent=35 // pred_region
          %303 = dma.done %s296, 128
        $region44: #{tpu_custom_call.1} parent=35 // pred_fallthru
          _
        %s304 = sand.u32 %s29, 1
        %s305 = scalar_lea.sflag [#allocation6], %s304
        %s306 = sand.u32 %s103, 1
        %s307 = smul.addr %s306, 8
        %s308 = scalar_lea.vmem [#allocation7], %s307
        // Predicated region
        $region45: #{tpu_custom_call.1} parent=35 // pred_check
          %p309 = pneg %p116
        $region46: #{tpu_custom_call.1} parent=35 // pred_check_branch
          %311 = sbr.rel (%p309) target = $region48
        $region47: #{tpu_custom_call.1} parent=35 // pred_region
          %312 = dma.done %s305, 128
        $region48: #{tpu_custom_call.1} parent=35 // pred_fallthru
          _
        %s313 = sand.u32 %s51, 1
        %s314 = scalar_lea.sflag [#allocation3], %s313
        %s315 = sand.u32 %s51, 1
        %s316 = smul.addr %s315, 8
        %s317 = scalar_lea.vmem [#allocation2], %s316
        %p318 = pneg %p64
        %p319 = pneg %p61
        %s320 = sand.u32 %s29, 1
        %s321 = scalar_lea.sflag [#allocation6], %s320
        %s322 = sand.u32 %s77, 1
        %s323 = smul.addr %s322, 8
        %s324 = scalar_lea.vmem [#allocation5], %s323
        %p325 = pneg %p90
        %p326 = pneg %p87
        %s327 = sand.u32 %s29, 1
        %s328 = scalar_lea.sflag [#allocation6], %s327
        %s329 = sand.u32 %s103, 1
        %s330 = smul.addr %s329, 8
        %s331 = scalar_lea.vmem [#allocation7], %s330
        %p332 = pneg %p116
        %p333 = pneg %p113
        %p334 = scmp.lt.s32.totalorder %s34, 0
        %s335 = scalar_select %p334, %s34, 0
        %s336 = smul.addr %s335, 2
        %s337 = scalar_lea.vmem %s3, %s336
        %p338 = pneg %p142
        %p339 = pneg %p139
        %p340 = pneg %p170
        %p341 = pneg %p167
        %s342 = sand.u32 %s157, 1
        %s343 = scalar_lea.sflag [#allocation4], %s342
        %s344 = sand.u32 %s157, 1
        %s345 = smul.addr %s344, 8
        %s346 = scalar_lea.vmem [#allocation8], %s345
        %p347 = pneg %p198
        %p348 = pneg %p195
        %s349 = sand.u32 %s185, 1
        %s350 = scalar_lea.sflag [#allocation10], %s349
        %s351 = sand.u32 %s185, 1
        %s352 = smul.addr %s351, 8
        %s353 = scalar_lea.vmem [#allocation9], %s352
        %p354 = scmp.lt.s32.totalorder %s34, 0
        %s355 = scalar_select %p354, %s34, 0
        %s356 = smul.addr %s355, 2
        %s357 = scalar_lea.vmem %s3, %s356
        %v360 = vld [vmem:[%s290] sm:$0xff]
        %v361 = vld [vmem:[%s299] sm:$0xff]
        %v362 = vld [vmem:[%s308] sm:$0xff]
        %v363 = vmul.f32 %v360, 0.17677669
        %vm364 = vcmask 261120
        %v366 = vsel %vm364, %v363, 0
        %v369 = vsel %vm364, %v361, 0
        %371 = vmatprep.subr.mxu0 0.0
        %372 = vmatpush1.xpose.msra.mxu0 %v369
        %373 = vmatprep.subr.mxu0 0.0
        %374 = vmatpush1.xpose.msra.mxu0 0.0
        %375 = vmatprep.subr.mxu0 0.0
        %376 = vmatpush1.xpose.msra.mxu0 0.0
        %377 = vmatprep.subr.mxu0 0.0
        %378 = vmatpush1.xpose.msra.mxu0 0.0
        %379 = vmatprep.subr.mxu0 0.0
        %380 = vmatpush1.xpose.msra.mxu0 0.0
        %381 = vmatprep.subr.mxu0 0.0
        %382 = vmatpush1.xpose.msra.mxu0 0.0
        %383 = vmatprep.subr.mxu0 0.0
        %384 = vmatpush1.xpose.msra.mxu0 0.0
        %385 = vmatprep.subr.mxu0 0.0
        %386 = vmatpush1.xpose.msra.mxu0 0.0
        %387 = vmatprep.subr.mxu0 0.0
        %388 = vmatpush1.xpose.msra.mxu0 0.0
        %389 = vmatprep.subr.mxu0 0.0
        %390 = vmatpush1.xpose.msra.mxu0 0.0
        %391 = vmatprep.subr.mxu0 0.0
        %392 = vmatpush1.xpose.msra.mxu0 0.0
        %393 = vmatprep.subr.mxu0 0.0
        %394 = vmatpush1.xpose.msra.mxu0 0.0
        %395 = vmatprep.subr.mxu0 0.0
        %396 = vmatpush1.xpose.msra.mxu0 0.0
        %397 = vmatprep.subr.mxu0 0.0
        %398 = vmatpush1.xpose.msra.mxu0 0.0
        %399 = vmatprep.subr.mxu0 0.0
        %400 = vmatpush1.xpose.msra.mxu0 0.0
        %401 = vmatprep.subr.mxu0 0.0
        %402 = vmatpush1.xpose.msra.mxu0 0.0
        %403 = vmatprep.subr.mxu0 0.0
        %404 = vmatpush1.xpose.msra.mxu0 0.0
        %405 = vmatprep.subr.mxu0 0.0
        %406 = vmatpush1.xpose.msra.mxu0 0.0
        %407 = vmatprep.subr.mxu0 0.0
        %408 = vmatpush1.xpose.msra.mxu0 0.0
        %409 = vmatprep.subr.mxu0 0.0
        %410 = vmatpush1.xpose.msra.mxu0 0.0
        %411 = vmatprep.subr.mxu0 0.0
        %412 = vmatpush1.xpose.msra.mxu0 0.0
        %413 = vmatprep.subr.mxu0 0.0
        %414 = vmatpush1.xpose.msra.mxu0 0.0
        %415 = vmatprep.subr.mxu0 0.0
        %416 = vmatpush1.xpose.msra.mxu0 0.0
        %417 = vmatprep.subr.mxu0 0.0
        %418 = vmatpush1.xpose.msra.mxu0 0.0
        %419 = vmatprep.subr.mxu0 0.0
        %420 = vmatpush1.xpose.msra.mxu0 0.0
        %421 = vmatprep.subr.mxu0 0.0
        %422 = vmatpush1.xpose.msra.mxu0 0.0
        %423 = vmatprep.subr.mxu0 0.0
        %424 = vmatpush1.xpose.msra.mxu0 0.0
        %425 = vmatprep.subr.mxu0 0.0
        %426 = vmatpush1.xpose.msra.mxu0 0.0
        %427 = vmatprep.subr.mxu0 0.0
        %428 = vmatpush1.xpose.msra.mxu0 0.0
        %429 = vmatprep.subr.mxu0 0.0
        %430 = vmatpush1.xpose.msra.mxu0 0.0
        %431 = vmatprep.subr.mxu0 0.0
        %432 = vmatpush1.xpose.msra.mxu0 0.0
        %433 = vmatprep.subr.mxu0 0.0
        %434 = vmatpush1.xpose.msra.mxu0 0.0
        %435 = vmatprep.mubr.f32.mxu0 0.0
        %436 = vmatmul.mubr.f32.gmra.mrb[0].mxu0 %v366
        %v437 = vpop.f32.mrb[0].mxu0
        %v438 = vadd.f32 0.0, %v437
        %v439 = vpop.f32.mrb[0].mxu0
        %440 = vdwg.mxu0
        %v441 = vld [vmem:[%s357] sm:$0x3]
        %vm442 = vnez %v441
        %v443 = vsel %vm442, 16843009, 0
        %v444 = vunpack.c.0.s8 %v443
        %vm445 = vcmp.ne.s32.totalorder %v444, 0
        %v446 = vsel %vm445, -inf, %v438
        %vm447 = vcmask 64512
        %v448 = vsel %vm447, %v446, -inf
        %449 = vmax.xlane.f32.xlu0 %v448
        %v450 = vpop.xlane.xlu0 %449
        %v451 = vsub.f32 %v446, %v450
        %v452 = vmul.f32 %v451, 1.442695
        %v453 = vpow.pop %v452
        %v454 = vsel %vm447, %v453, 0.0
        %455 = vadd.xlane.f32.xlu0 %v454
        %v456 = vpop.xlane.xlu0 %455
        %v457 = vrcp.pop %v456
        %v459 = vsel %vm447, %v453, 0
        %461 = vmatprep.subr.mxu0 0.0
        %462 = vmatpush1.msra.mxu0 %v362
        %463 = vmatprep.subr.mxu0 0.0
        %464 = vmatpush1.msra.mxu0 0.0
        %465 = vmatprep.subr.mxu0 0.0
        %466 = vmatpush1.msra.mxu0 0.0
        %467 = vmatprep.subr.mxu0 0.0
        %468 = vmatpush1.msra.mxu0 0.0
        %469 = vmatprep.subr.mxu0 0.0
        %470 = vmatpush1.msra.mxu0 0.0
        %471 = vmatprep.subr.mxu0 0.0
        %472 = vmatpush1.msra.mxu0 0.0
        %473 = vmatprep.subr.mxu0 0.0
        %474 = vmatpush1.msra.mxu0 0.0
        %475 = vmatprep.subr.mxu0 0.0
        %476 = vmatpush1.msra.mxu0 0.0
        %477 = vmatprep.subr.mxu0 0.0
        %478 = vmatpush1.msra.mxu0 0.0
        %479 = vmatprep.subr.mxu0 0.0
        %480 = vmatpush1.msra.mxu0 0.0
        %481 = vmatprep.subr.mxu0 0.0
        %482 = vmatpush1.msra.mxu0 0.0
        %483 = vmatprep.subr.mxu0 0.0
        %484 = vmatpush1.msra.mxu0 0.0
        %485 = vmatprep.subr.mxu0 0.0
        %486 = vmatpush1.msra.mxu0 0.0
        %487 = vmatprep.subr.mxu0 0.0
        %488 = vmatpush1.msra.mxu0 0.0
        %489 = vmatprep.subr.mxu0 0.0
        %490 = vmatpush1.msra.mxu0 0.0
        %491 = vmatprep.subr.mxu0 0.0
        %492 = vmatpush1.msra.mxu0 0.0
        %493 = vmatprep.subr.mxu0 0.0
        %494 = vmatpush1.msra.mxu0 0.0
        %495 = vmatprep.subr.mxu0 0.0
        %496 = vmatpush1.msra.mxu0 0.0
        %497 = vmatprep.subr.mxu0 0.0
        %498 = vmatpush1.msra.mxu0 0.0
        %499 = vmatprep.subr.mxu0 0.0
        %500 = vmatpush1.msra.mxu0 0.0
        %501 = vmatprep.subr.mxu0 0.0
        %502 = vmatpush1.msra.mxu0 0.0
        %503 = vmatprep.subr.mxu0 0.0
        %504 = vmatpush1.msra.mxu0 0.0
        %505 = vmatprep.subr.mxu0 0.0
        %506 = vmatpush1.msra.mxu0 0.0
        %507 = vmatprep.subr.mxu0 0.0
        %508 = vmatpush1.msra.mxu0 0.0
        %509 = vmatprep.subr.mxu0 0.0
        %510 = vmatpush1.msra.mxu0 0.0
        %511 = vmatprep.subr.mxu0 0.0
        %512 = vmatpush1.msra.mxu0 0.0
        %513 = vmatprep.subr.mxu0 0.0
        %514 = vmatpush1.msra.mxu0 0.0
        %515 = vmatprep.subr.mxu0 0.0
        %516 = vmatpush1.msra.mxu0 0.0
        %517 = vmatprep.subr.mxu0 0.0
        %518 = vmatpush1.msra.mxu0 0.0
        %519 = vmatprep.subr.mxu0 0.0
        %520 = vmatpush1.msra.mxu0 0.0
        %521 = vmatprep.subr.mxu0 0.0
        %522 = vmatpush1.msra.mxu0 0.0
        %523 = vmatprep.subr.mxu0 0.0
        %524 = vmatpush1.msra.mxu0 0.0
        %525 = vmatprep.mubr.f32.mxu0 0.0
        %526 = vmatmul.mubr.f32.gmra.mrb[0].mxu0 %v459
        %v527 = vpop.f32.mrb[0].mxu0
        %v528 = vadd.f32 0.0, %v527
        %v529 = vpop.f32.mrb[0].mxu0
        %530 = vdwg.mxu0
        %v531 = vmul.f32 %v528, %v457
        %v532 = vmul.f32 %v453, %v457
        %533 = vst.msk [vmem:[%s353] sm:$0xff] %vm447, %v532
        %534 = vst.msk [vmem:[%s346] sm:$0xff] %vm364, %v531
        %s535 = sand.u32 %s157, 1
        %s536 = scalar_lea.sflag [#allocation4], %s535
        %s537 = sand.u32 %s157, 1
        %s538 = smul.addr %s537, 8
        %s539 = scalar_lea.vmem [#allocation8], %s538
        %s540 = sand.u32 %s185, 1
        %s541 = scalar_lea.sflag [#allocation10], %s540
        %s542 = sand.u32 %s185, 1
        %s543 = smul.addr %s542, 8
        %s544 = scalar_lea.vmem [#allocation9], %s543
        // Predicated region
        $region49: #{tpu_custom_call.1} parent=35 // pred_check
          %p545 = pneg %p167
        $region50: #{tpu_custom_call.1} parent=35 // pred_check_branch
          %547 = sbr.rel (%p545) target = $region52
        $region51: #{tpu_custom_call.1} parent=35 // pred_region
          %s549 = ssub.s32 128, 128
          %550 = vsyncadd %s536, %s549
          %s551 = sadd.s32 %s34, %s33
          %s552 = smul.addr %s551, 128
          %s553 = scalar_lea.hbm %s4, %s552
          %s555 = sshll.u32 %s539, 4
          %s556 = int_to_ptr.vmem [resolvable:$true] %s555
          %558 = dma.vmem_to_hbm [thread:$0]  %s556, 128, %s553, %s536
        $region52: #{tpu_custom_call.1} parent=35 // pred_fallthru
          _
        // Predicated region
        $region53: #{tpu_custom_call.1} parent=35 // pred_check
          %p559 = pneg %p195
        $region54: #{tpu_custom_call.1} parent=35 // pred_check_branch
          %561 = sbr.rel (%p559) target = $region56
        $region55: #{tpu_custom_call.1} parent=35 // pred_region
          %s563 = ssub.s32 128, 128
          %564 = vsyncadd %s541, %s563
          %s565 = sadd.s32 %s34, %s33
          %s566 = smul.addr %s565, 128
          %s567 = scalar_lea.hbm %s5, %s566
          %s569 = sshll.u32 %s544, 4
          %s570 = int_to_ptr.vmem [resolvable:$true] %s569
          %572 = dma.vmem_to_hbm [thread:$0]  %s570, 128, %s567, %s541
        $region56: #{tpu_custom_call.1} parent=35 // pred_fallthru
          _
      $region36: #{tpu_custom_call.1} parent=5 // pred_fallthru
        _
      %p573 = scmp.le.s32.totalorder 2, %s24
      // Predicated region
      $region57: #{tpu_custom_call.1} parent=5 // pred_check
        %p574 = pneg %p573
      $region58: #{tpu_custom_call.1} parent=5 // pred_check_branch
        %576 = sbr.rel (%p574) target = $region60
      $region59: #{tpu_custom_call.1} parent=5 // pred_region
        %s577 = ssub.s32 %s24, 2
        // Predicated region
        $region61: #{tpu_custom_call.1} parent=59 // pred_check
          %p578 = pneg %p173
        $region62: #{tpu_custom_call.1} parent=59 // pred_check_branch
          %580 = sbr.rel (%p578) target = $region64
        $region63: #{tpu_custom_call.1} parent=59 // pred_region
          %s581 = sand.u32 %s158, 1
          %s582 = scalar_lea.sflag [#allocation4], %s581
          %s583 = sand.u32 %s158, 1
          %s584 = smul.addr %s583, 8
          %s585 = scalar_lea.vmem [#allocation8], %s584
          %586 = dma.done %s582, 128
        $region64: #{tpu_custom_call.1} parent=59 // pred_fallthru
          _
        // Predicated region
        $region65: #{tpu_custom_call.1} parent=59 // pred_check
          %p587 = pneg %p201
        $region66: #{tpu_custom_call.1} parent=59 // pred_check_branch
          %589 = sbr.rel (%p587) target = $region68
        $region67: #{tpu_custom_call.1} parent=59 // pred_region
          %s590 = sand.u32 %s186, 1
          %s591 = scalar_lea.sflag [#allocation10], %s590
          %s592 = sand.u32 %s186, 1
          %s593 = smul.addr %s592, 8
          %s594 = scalar_lea.vmem [#allocation9], %s593
          %595 = dma.done %s591, 128
        $region68: #{tpu_custom_call.1} parent=59 // pred_fallthru
          _
      $region60: #{tpu_custom_call.1} parent=5 // pred_fallthru
        _
    $region6: #{tpu_custom_call.1} parent=1 // loop_footer
      %s28 = sadd.s32 1, %s24
    $region7: #{tpu_custom_call.1} parent=1 // loop_footer_branch
      %23 = sbr.rel target = $region3
    $region8: #{tpu_custom_call.1} parent=1 // loop_exit
      _
    %596 = vsyncpa [#allocation3], 1
    %s597 = scalar_lea.sflag [#allocation3], 1
    %598 = vsyncpa %s597, 1
    %599 = vsyncpa [#allocation6], 1
    %s600 = scalar_lea.sflag [#allocation6], 1
    %601 = vsyncpa %s600, 1
    %602 = vsyncpa [#allocation4], 1
    %s603 = scalar_lea.sflag [#allocation4], 1
    %604 = vsyncpa %s603, 1
    %605 = vsyncpa [#allocation10], 1
    %s606 = scalar_lea.sflag [#allocation10], 1
    %607 = vsyncpa %s606, 1

</llo_original>
